<compile_context>
chip_gen: v5e
topology: v5e:2x2
jax: 0.10.0
libtpu: 0.0.40
codegen_flags: <defaults>
</compile_context>

<pallas_src>
import functools

import numpy as np
import jax
import jax.numpy as jnp
from jax.experimental import pallas as pl
from jax.experimental.pallas import tpu as pltpu


@functools.lru_cache(maxsize=None)
def _interp_matrix_np(out_size: int, in_size: int) -> np.ndarray:
    """Interpolation matrix matching torch.nn.functional.interpolate
    (mode='bilinear', align_corners=False/None, antialias=False), one axis."""
    scale = in_size / out_size
    dst = np.arange(out_size, dtype=np.float64)
    src = (dst + 0.5) * scale - 0.5
    src = np.maximum(src, 0.0)                       # PyTorch clamps negative source idx
    i0 = np.minimum(np.floor(src).astype(np.int64), in_size - 1)
    i1 = np.minimum(i0 + 1, in_size - 1)
    w1 = (src - i0).astype(np.float32)
    w0 = np.float32(1.0) - w1
    m = np.zeros((out_size, in_size), np.float32)
    rows = np.arange(out_size)
    np.add.at(m, (rows, i0), w0)
    np.add.at(m, (rows, i1), w1)
    return m


def _vmem_limit_bytes() -> int:
    """Generation-aware VMEM limit: ~3/4 of physical capacity (v7x 64 MiB -> 48 MiB,
    v5e/v6e 128 MiB -> 96 MiB). Falls back to a conservative 48 MiB."""
    cap = 64 * 1024 * 1024
    try:
        info = pltpu.get_tpu_info()
        cap = int(getattr(info, "vmem_capacity_bytes", cap))
    except Exception:
        pass
    return (cap * 3) // 4


def _pick_plane_chunk(P: int, H: int, W: int, S: int, budget_bytes: int) -> int:
    """Largest divisor B of P that (a) leaves >= 2 grid steps when P >= 2 (so the
    'parallel' grid axis shards across v7x's two TensorCores) and (b) fits the
    VMEM budget including double-buffering.  No flop-waste term is needed anymore:
    the batched matmuls have no structural zeros."""
    def footprint(B: int) -> int:
        xblk   = 2 * B * H * W * 2                     # bf16 input chunk, double-buffered
        oblk   = 2 * B * S * S * 4                     # f32 output chunk, double-buffered
        consts = 2 * B * (S * H + W * S) * 2           # broadcast R / Cm^T, double-buffered
        interm = B * H * S * 4 + B * H * S * 2 + B * S * S * 4   # stage-1/2 temporaries
        return xblk + oblk + consts + interm

    max_b = P if P == 1 else P // 2
    for B in range(max_b, 0, -1):
        if P % B == 0 and footprint(B) <= budget_bytes:
            return B
    return 1


def _resize_kernel(r_ref, ct_ref, x_ref, o_ref):
    # r_ref:  (B, S, H)  row-interp matrix, broadcast over planes (grid-invariant)
    # ct_ref: (B, W, S)  column-interp matrix (Cm^T), broadcast (grid-invariant)
    # x_ref:  (B, H, W)  chunk of B input planes (bf16)
    # o_ref:  (B, S, S)  resized planes (f32)
    # Stage 1: column interpolation, contract W  ->  (B, H, S), f32 accumulate.
    tmp = jnp.einsum("bhw,bwt->bht", x_ref[...], ct_ref[...],
                     preferred_element_type=jnp.float32)
    # Stage 2: row interpolation, contract H  ->  (B, S, S), f32 accumulate.
    out = jnp.einsum("bsh,bht->bst", r_ref[...], tmp.astype(jnp.bfloat16),
                     preferred_element_type=jnp.float32)
    o_ref[...] = out.astype(o_ref.dtype)


def image_encoder_forward(x: jnp.ndarray, input_size: int = 32) -> jnp.ndarray:
    """Pallas equivalent of ImageEncoder.forward up to the (undefined) encoder call."""
    N, C, H, W = x.shape
    S = int(input_size)
    P = N * C

    vmem_limit = _vmem_limit_bytes()
    B = _pick_plane_chunk(P, H, W, S, budget_bytes=vmem_limit // 2)
    G = P // B

    # Host-side (numpy, cached) interpolation constants, pre-broadcast over the
    # plane chunk so the kernel does plain batched matmuls (no in-kernel transpose,
    # broadcast, or block-diagonal zero padding).
    r_np = _interp_matrix_np(S, H)                       # (S, H)
    ct_np = _interp_matrix_np(S, W).T                    # (W, S), pre-transposed on host
    r_b = jnp.asarray(np.broadcast_to(r_np[None], (B, S, H)), dtype=jnp.bfloat16)
    ct_b = jnp.asarray(np.broadcast_to(ct_np[None], (B, W, S)), dtype=jnp.bfloat16)

    # Plane-major view of the input: pure leading-dim reshape (no HBM transpose pass).
    # bf16 cast halves the kernel's input DMA bytes; in the full model this cast
    # should fuse into the producer of x.
    x_planes = x.reshape(P, H, W).astype(jnp.bfloat16)

    out_planes = pl.pallas_call(
        _resize_kernel,
        out_shape=jax.ShapeDtypeStruct((P, S, S), jnp.float32),
        grid_spec=pltpu.PrefetchScalarGridSpec(
            num_scalar_prefetch=0,
            grid=(G,),
            in_specs=[
                pl.BlockSpec((B, S, H), lambda i: (0, 0, 0)),   # R (grid-invariant)
                pl.BlockSpec((B, W, S), lambda i: (0, 0, 0)),   # Cm^T (grid-invariant)
                pl.BlockSpec((B, H, W), lambda i: (i, 0, 0)),   # B planes per step
            ],
            out_specs=pl.BlockSpec((B, S, S), lambda i: (i, 0, 0)),
        ),
        compiler_params=pltpu.CompilerParams(
            dimension_semantics=("parallel",),     # >= 2 steps -> shards on v7x's 2 TCs
            vmem_limit_bytes=vmem_limit,           # explicit (v5e scoped default is 16 MiB)
        ),
    )(r_b, ct_b, x_planes)

    # (P, S, S) -> NCHW: free leading-dim reshape, no extra HBM pass.
    out = out_planes.reshape(N, C, S, S)
    # TODO(synk): GradualStyleEncoder (IR-SE 50 backbone + style heads) is referenced
    # but not defined in the provided model.py, so self.encoder(x) cannot be
    # reproduced; only the F.interpolate stage is implemented.
    return out


if __name__ == "__main__":
    key = jax.random.PRNGKey(0)
    N, C, H, W = 2, 4, 16, 16
    INPUT_SIZE = 32
    x = jax.random.normal(key, (N, C, H, W), dtype=jnp.float32)

    y = image_encoder_forward(x, input_size=INPUT_SIZE)
    y = jax.block_until_ready(y)

    # Sanity check against a plain-JAX fp32 evaluation of the same separable bilinear.
    R = jnp.asarray(_interp_matrix_np(INPUT_SIZE, H))
    Cm = jnp.asarray(_interp_matrix_np(INPUT_SIZE, W))
    ref = jnp.einsum("sh,nchw,tw->ncst", R, x, Cm)
    assert y.shape == (N, C, INPUT_SIZE, INPUT_SIZE)
    # bf16 input path -> loosened tolerance vs the fp32 reference.
    assert jnp.allclose(y, ref, rtol=3e-2, atol=3e-2), float(jnp.max(jnp.abs(y - ref)))

    print("KERNEL_OK")
</pallas_src>

<mosaic_0001>
module attributes {stable_mosaic.version = 11 : i64} {
  func.func @_resize_kernel(%arg0: i32, %arg1: memref<4x32x16xbf16, #tpu.memory_space<vmem>>, %arg2: memref<4x16x32xbf16, #tpu.memory_space<vmem>>, %arg3: memref<4x16x16xbf16, #tpu.memory_space<vmem>>, %arg4: memref<4x32x32xf32, #tpu.memory_space<vmem>>) attributes {dimension_semantics = [#tpu.dimension_semantics<parallel>], iteration_bounds = array<i64: 2>, scalar_prefetch = 0 : i64, scratch_operands = 0 : i64, tpu.core_type = #tpu.core_type<tc>, window_params = [{pipeline_mode = #tpu.pipeline_mode<synchronous>, transform_indices = @transform_0, window_bounds = array<i64: 4, 32, 16>}, {pipeline_mode = #tpu.pipeline_mode<synchronous>, transform_indices = @transform_1, window_bounds = array<i64: 4, 16, 32>}, {transform_indices = @transform_2, window_bounds = array<i64: 4, 16, 16>}, {transform_indices = @transform_3, window_bounds = array<i64: 4, 32, 32>}]} {
    %c0 = arith.constant 0 : index
    %c0_0 = arith.constant 0 : index
    %c0_1 = arith.constant 0 : index
    %0 = vector.load %arg3[%c0, %c0_0, %c0_1] : memref<4x16x16xbf16, #tpu.memory_space<vmem>>, vector<4x16x16xbf16>
    %c0_2 = arith.constant 0 : index
    %c0_3 = arith.constant 0 : index
    %c0_4 = arith.constant 0 : index
    %1 = vector.load %arg2[%c0_2, %c0_3, %c0_4] : memref<4x16x32xbf16, #tpu.memory_space<vmem>>, vector<4x16x32xbf16>
    "tpu.trace_start"() <{level = 10 : i32, message = "bhw,bwt->bht"}> : () -> ()
    %cst = arith.constant dense<0.000000e+00> : vector<4x16x32xf32>
    %2 = tpu.matmul %0, %1, %cst {dimension_numbers = #tpu.dot_dimension_numbers<[2], [1], [1], [2], [0, 0, 0, 1, 1, 2], [0], [0]>} : vector<4x16x16xbf16>, vector<4x16x32xbf16>, vector<4x16x32xf32> -> vector<4x16x32xf32>
    "tpu.trace_stop"() : () -> ()
    %c0_5 = arith.constant 0 : index
    %c0_6 = arith.constant 0 : index
    %c0_7 = arith.constant 0 : index
    %3 = vector.load %arg1[%c0_5, %c0_6, %c0_7] : memref<4x32x16xbf16, #tpu.memory_space<vmem>>, vector<4x32x16xbf16>
    %4 = arith.truncf %2 : vector<4x16x32xf32> to vector<4x16x32xbf16>
    "tpu.trace_start"() <{level = 10 : i32, message = "bsh,bht->bst"}> : () -> ()
    %cst_8 = arith.constant dense<0.000000e+00> : vector<4x32x32xf32>
    %5 = tpu.matmul %3, %4, %cst_8 {dimension_numbers = #tpu.dot_dimension_numbers<[2], [1], [1], [2], [0, 0, 0, 1, 1, 2], [0], [0]>} : vector<4x32x16xbf16>, vector<4x16x32xbf16>, vector<4x32x32xf32> -> vector<4x32x32xf32>
    "tpu.trace_stop"() : () -> ()
    %c0_9 = arith.constant 0 : index
    %c0_10 = arith.constant 0 : index
    %c0_11 = arith.constant 0 : index
    %6 = vector.load %arg4[%c0_9, %c0_10, %c0_11] : memref<4x32x32xf32, #tpu.memory_space<vmem>>, vector<4x32x32xf32>
    tpu.vector_store %arg4[%c0_9, %c0_10, %c0_11], %5 {strides = array<i32>} : memref<4x32x32xf32, #tpu.memory_space<vmem>>, vector<4x32x32xf32>,
    return
  }
  func.func @transform_0(%arg0: i32) -> (i32, i32, i32) {
    %c0_i32 = arith.constant 0 : i32
    %c0_i32_0 = arith.constant 0 : i32
    %c0_i32_1 = arith.constant 0 : i32
    %c0_i32_2 = arith.constant 0 : i32
    return %c0_i32, %c0_i32_0, %c0_i32_1 : i32, i32, i32
  }
  func.func @transform_1(%arg0: i32) -> (i32, i32, i32) {
    %c0_i32 = arith.constant 0 : i32
    %c0_i32_0 = arith.constant 0 : i32
    %c0_i32_1 = arith.constant 0 : i32
    %c0_i32_2 = arith.constant 0 : i32
    return %c0_i32, %c0_i32_0, %c0_i32_1 : i32, i32, i32
  }
  func.func @transform_2(%arg0: i32) -> (i32, i32, i32) {
    %c0_i32 = arith.constant 0 : i32
    %c0_i32_0 = arith.constant 0 : i32
    %c0_i32_1 = arith.constant 0 : i32
    return %arg0, %c0_i32, %c0_i32_0 : i32, i32, i32
  }
  func.func @transform_3(%arg0: i32) -> (i32, i32, i32) {
    %c0_i32 = arith.constant 0 : i32
    %c0_i32_0 = arith.constant 0 : i32
    %c0_i32_1 = arith.constant 0 : i32
    return %arg0, %c0_i32, %c0_i32_0 : i32, i32, i32
  }
}

</mosaic_0001>

<llo_original>
// kernel: tpu_custom_call.1
$region0: #{tpu_custom_call.1}
  #allocation0 [shape = 'u32[]', space=smem, size = 0x4, offset = 0x4, fixed_abs, tag = 'smem constant byte address 0x4 - core index']
  #allocation1 [shape = 'u32[72,128]{1,0:T(1,128)}', space=vmem, size = 0x9000, scoped, tag = 'internal scratch']
  %s0 = inlined_call_operand.vmem [shape: bf16[4,32,16], index: 0, kind: input, shape index: {}]
  %s1 = inlined_call_operand.vmem [shape: bf16[4,16,32], index: 1, kind: input, shape index: {}]
  %s2 = inlined_call_operand.vmem [shape: bf16[8,16,16], index: 2, kind: input, shape index: {}]
  %s3 = inlined_call_operand.hbm [shape: f32[8,32,32], index: 3, kind: output, shape index: {}]
  %s4 = sld [smem:[#allocation0]]
  $region45: #{tpu_custom_call.1} parent=0
    _
  %s6 = ssub.s32 1, %s4
  %s7 = scalar_select 0, %s6, %s4
  $region1: #{tpu_custom_call.1} parent=0
    #allocation2 [shape = 'u8[131072]{0}', space=vmem, size = 0x20000, scoped, tag = 'output window, operand 0']
    #allocation3 [shape = 's32[2]{0}', space=sflag, size = 0x8, scoped, tag = 'scoped memory for tpu_custom_call.1']
    %8 = vsyncpa [#allocation3], 0
    %s9 = scalar_lea.sflag [#allocation3], 1
    %10 = vsyncpa %s9, 0
    loop: start=0, step=1, limit=4
    $region2: #{tpu_custom_call.1} parent=1 // loop_pre_header
      _
    $region3: #{tpu_custom_call.1} parent=1 // loop_header
      %s12 = sphi 0, %s16
      %p13 = scmp.ge.s32.totalorder %s12, 4
      %s20 = sphi 0, %s20
      %s22 = sphi 0, %s20
      %s23 = sphi 0, %s22
      %s37 = sphi 0, %s23
      %s41 = sphi 0, %s41
      %s43 = sphi 0, %s41
      %s44 = sphi 0, %s43
      %s58 = sphi 0, %s44
      %s64 = sphi 0, %s66
      %s67 = sphi 0, %s64
      %s68 = sphi 0, %s67
      %s84 = sphi 0, %s68
      %s90 = sphi 0, %s92
      %s93 = sphi 0, %s90
      %s94 = sphi 0, %s93
      %s110 = sphi 0, %s94
    $region4: #{tpu_custom_call.1} parent=1 // loop_header_branch
      %15 = sbr.rel (%p13) target = $region8
    $region5: #{tpu_custom_call.1} parent=1 // loop_body
      %s17 = ssub.s32 %s12, 1
      %s18 = ssub.s32 %s12, 2
      %s19 = sadd.s32 %s12, 1
      %s21 = sadd.s32 %s20, 1
      %p24 = scmp.eq.s32.totalorder %s12, 1
      %p25 = scmp.ne.s32.totalorder %s20, %s22
      %p26 = scmp.eq.s32.totalorder %s12, 0
      %p27 = por %p25, %p26
      %p28 = scmp.ne.s32.totalorder %s20, %s22
      %p29 = scmp.eq.s32.totalorder %s17, 1
      %p30 = por %p28, %p29
      %p31 = scmp.ne.s32.totalorder %s22, %s23
      %p32 = scmp.eq.s32.totalorder %s17, 0
      %p33 = por %p31, %p32
      %p34 = scmp.ne.s32.totalorder %s22, %s23
      %p35 = scmp.eq.s32.totalorder %s18, 1
      %p36 = por %p34, %p35
      %p38 = scmp.ne.s32.totalorder %s23, %s37
      %p39 = scmp.eq.s32.totalorder %s18, 0
      %p40 = por %p38, %p39
      %s42 = sadd.s32 %s41, 1
      %p45 = scmp.eq.s32.totalorder %s12, 1
      %p46 = scmp.ne.s32.totalorder %s41, %s43
      %p47 = scmp.eq.s32.totalorder %s12, 0
      %p48 = por %p46, %p47
      %p49 = scmp.ne.s32.totalorder %s41, %s43
      %p50 = scmp.eq.s32.totalorder %s17, 1
      %p51 = por %p49, %p50
      %p52 = scmp.ne.s32.totalorder %s43, %s44
      %p53 = scmp.eq.s32.totalorder %s17, 0
      %p54 = por %p52, %p53
      %p55 = scmp.ne.s32.totalorder %s43, %s44
      %p56 = scmp.eq.s32.totalorder %s18, 1
      %p57 = por %p55, %p56
      %p59 = scmp.ne.s32.totalorder %s44, %s58
      %p60 = scmp.eq.s32.totalorder %s18, 0
      %p61 = por %p59, %p60
      %s62 = ssub.s32 %s12, %s19
      %p63 = scmp.eq.s32.totalorder %s62, 0
      %s65 = sadd.s32 %s64, 1
      %s66 = scalar_select %p63, %s64, %s65
      %p69 = pneg %p63
      %p70 = scmp.eq.s32.totalorder %s12, 1
      %p71 = por %p69, %p70
      %p72 = scmp.ne.s32.totalorder %s64, %s67
      %p73 = scmp.eq.s32.totalorder %s12, 0
      %p74 = por %p72, %p73
      %p75 = scmp.ne.s32.totalorder %s64, %s67
      %p76 = scmp.eq.s32.totalorder %s17, 1
      %p77 = por %p75, %p76
      %p78 = scmp.ne.s32.totalorder %s67, %s68
      %p79 = scmp.eq.s32.totalorder %s17, 0
      %p80 = por %p78, %p79
      %p81 = scmp.ne.s32.totalorder %s67, %s68
      %p82 = scmp.eq.s32.totalorder %s18, 1
      %p83 = por %p81, %p82
      %p85 = scmp.ne.s32.totalorder %s68, %s84
      %p86 = scmp.eq.s32.totalorder %s18, 0
      %p87 = por %p85, %p86
      %s88 = ssub.s32 %s12, %s19
      %p89 = scmp.eq.s32.totalorder %s88, 0
      %s91 = sadd.s32 %s90, 1
      %s92 = scalar_select %p89, %s90, %s91
      %p95 = pneg %p89
      %p96 = scmp.eq.s32.totalorder %s12, 1
      %p97 = por %p95, %p96
      %p98 = scmp.ne.s32.totalorder %s90, %s93
      %p99 = scmp.eq.s32.totalorder %s12, 0
      %p100 = por %p98, %p99
      %p101 = scmp.ne.s32.totalorder %s90, %s93
      %p102 = scmp.eq.s32.totalorder %s17, 1
      %p103 = por %p101, %p102
      %p104 = scmp.ne.s32.totalorder %s93, %s94
      %p105 = scmp.eq.s32.totalorder %s17, 0
      %p106 = por %p104, %p105
      %p107 = scmp.ne.s32.totalorder %s93, %s94
      %p108 = scmp.eq.s32.totalorder %s18, 1
      %p109 = por %p107, %p108
      %p111 = scmp.ne.s32.totalorder %s94, %s110
      %p112 = scmp.eq.s32.totalorder %s18, 0
      %p113 = por %p111, %p112
      %p114 = scmp.le.s32.totalorder 1, %s12
      %p115 = scmp.lt.s32.totalorder %s12, 3
      %p116 = pnand %p114, %p115
      %p117 = pneg %p116
      // Predicated region
      $region9: #{tpu_custom_call.1} parent=5 // pred_check
        _
      $region10: #{tpu_custom_call.1} parent=5 // pred_check_branch
        %119 = sbr.rel (%p116) target = $region12
      $region11: #{tpu_custom_call.1} parent=5 // pred_region
        %s120 = ssub.s32 %s12, 1
        // Predicated region
        $region13: #{tpu_custom_call.1} parent=11 // pred_check
          %p121 = pneg %p33
        $region14: #{tpu_custom_call.1} parent=11 // pred_check_branch
          %123 = sbr.rel (%p121) target = $region16
        $region15: #{tpu_custom_call.1} parent=11 // pred_region
          _
        $region16: #{tpu_custom_call.1} parent=11 // pred_fallthru
          _
        // Predicated region
        $region17: #{tpu_custom_call.1} parent=11 // pred_check
          %p124 = pneg %p54
        $region18: #{tpu_custom_call.1} parent=11 // pred_check_branch
          %126 = sbr.rel (%p124) target = $region20
        $region19: #{tpu_custom_call.1} parent=11 // pred_region
          _
        $region20: #{tpu_custom_call.1} parent=11 // pred_fallthru
          _
      $region12: #{tpu_custom_call.1} parent=5 // pred_fallthru
        _
      %p127 = scmp.lt.s32.totalorder %s12, 2
      // Predicated region
      $region21: #{tpu_custom_call.1} parent=5 // pred_check
        %p128 = pneg %p127
      $region22: #{tpu_custom_call.1} parent=5 // pred_check_branch
        %130 = sbr.rel (%p128) target = $region24
      $region23: #{tpu_custom_call.1} parent=5 // pred_region
        // Predicated region
        $region25: #{tpu_custom_call.1} parent=23 // pred_check
          %p131 = pneg %p74
        $region26: #{tpu_custom_call.1} parent=23 // pred_check_branch
          %133 = sbr.rel (%p131) target = $region28
        $region27: #{tpu_custom_call.1} parent=23 // pred_region
          %s134 = smul.u32 4, %s12
          %p135 = scmp.lt.s32.totalorder %s134, 7
          %s136 = scalar_select %p135, %s134, 7
          %s137 = smul.addr %s136, 2
          %s138 = smul.addr %s137, 4
          %s139 = scalar_lea.vmem %s2, %s138
          %s140 = smul.u32 4, %s12
        $region28: #{tpu_custom_call.1} parent=23 // pred_fallthru
          _
      $region24: #{tpu_custom_call.1} parent=5 // pred_fallthru
        _
      %p141 = scmp.le.s32.totalorder 1, %s12
      %p142 = scmp.lt.s32.totalorder %s12, 3
      %p143 = pnand %p141, %p142
      %p144 = pneg %p143
      // Predicated region
      $region29: #{tpu_custom_call.1} parent=5 // pred_check
        _
      $region30: #{tpu_custom_call.1} parent=5 // pred_check_branch
        %146 = sbr.rel (%p143) target = $region32
      $region31: #{tpu_custom_call.1} parent=5 // pred_region
        %s147 = ssub.s32 %s12, 1
        %p148 = pneg %p33
        %p149 = pneg %p30
        %p150 = pneg %p54
        %p151 = pneg %p51
        %s152 = smul.u32 4, %s17
        %p153 = scmp.lt.s32.totalorder %s152, 7
        %s154 = scalar_select %p153, %s152, 7
        %s155 = smul.addr %s154, 2
        %s156 = smul.addr %s155, 4
        %s157 = scalar_lea.vmem %s2, %s156
        %p158 = pneg %p80
        %p159 = pneg %p77
        %p160 = pneg %p106
        %p161 = pneg %p103
        %s162 = sand.u32 %s93, 1
        %s163 = scalar_lea.sflag [#allocation3], %s162
        %s164 = sand.u32 %s93, 1
        %s165 = smul.addr %s164, 128
        %s166 = scalar_lea.vmem [#allocation2], %s165
        %s167 = smul.u32 4, %s17
        %p168 = scmp.lt.s32.totalorder %s167, 7
        %s169 = scalar_select %p168, %s167, 7
        %s170 = smul.addr %s169, 2
        %s171 = smul.addr %s170, 4
        %s172 = scalar_lea.vmem %s2, %s171
        %s173 = smul.u32 4, %s17
        %s174 = smul.u32 4, %s17
        %v176 = vld [vmem:[%s172] sm:$0xf]
        %v177 = vld [vmem:[%s172 + $0x4] sm:$0xf]
        %v178 = vld [vmem:[%s172 + $0x8] sm:$0xf]
        %v179 = vld [vmem:[%s172 + $0xc] sm:$0xf]
        %v180 = vld [vmem:[%s172 + $0x10] sm:$0xf]
        %v181 = vld [vmem:[%s172 + $0x14] sm:$0xf]
        %v182 = vld [vmem:[%s172 + $0x18] sm:$0xf]
        %v183 = vld [vmem:[%s172 + $0x1c] sm:$0xf]
        %v184 = vld [vmem:[%s1] sm:$0xf]
        %v185 = vld [vmem:[%s1 + $0x4] sm:$0xf]
        %v186 = vld [vmem:[%s1 + $0x8] sm:$0xf]
        %v187 = vld [vmem:[%s1 + $0xc] sm:$0xf]
        %v188 = vld [vmem:[%s1 + $0x10] sm:$0xf]
        %v189 = vld [vmem:[%s1 + $0x14] sm:$0xf]
        %v190 = vld [vmem:[%s1 + $0x18] sm:$0xf]
        %v191 = vld [vmem:[%s1 + $0x1c] sm:$0xf]
        %v194 = vunpack.c.l.b16 %v176
        %v195 = vunpack.c.l.b16 %v177
        %v196 = vpack.c.b16 %v195, %v194
        %v199 = vunpack.c.l.b16 %v184
        %v200 = vunpack.c.l.b16 %v185
        %v201 = vpack.c.b16 %v200, %v199
        %vm203 = vcmask 130048
        %v205 = vsel %vm203, %v196, 0
        %207 = vmatpush.bf16.msra.mxu0 0
        %208 = vmatpush.bf16.msra.mxu0 0
        %209 = vmatpush.bf16.msra.mxu0 0
        %210 = vmatpush.bf16.msra.mxu0 0
        %211 = vmatpush.bf16.msra.mxu0 0
        %212 = vmatpush.bf16.msra.mxu0 0
        %213 = vmatpush.bf16.msra.mxu0 0
        %214 = vmatpush.bf16.msra.mxu0 %v201
        %215 = vmatmul.bf16.gmra.mxu0 %v205
        %v216 = vpop.f32.mrf.mxu0
        %v217 = vadd.f32 0.0, %v216
        %v218 = vpop.f32.mrf.mxu0
        %v219 = vadd.f32 0.0, %v218
        %220 = vdwg.mxu0
        %v223 = vunpack.c.l.b16 %v178
        %v224 = vunpack.c.l.b16 %v179
        %v225 = vpack.c.b16 %v224, %v223
        %v228 = vunpack.c.l.b16 %v186
        %v229 = vunpack.c.l.b16 %v187
        %v230 = vpack.c.b16 %v229, %v228
        %v233 = vsel %vm203, %v225, 0
        %235 = vmatpush.bf16.msra.mxu0 0
        %236 = vmatpush.bf16.msra.mxu0 0
        %237 = vmatpush.bf16.msra.mxu0 0
        %238 = vmatpush.bf16.msra.mxu0 0
        %239 = vmatpush.bf16.msra.mxu0 0
        %240 = vmatpush.bf16.msra.mxu0 0
        %241 = vmatpush.bf16.msra.mxu0 0
        %242 = vmatpush.bf16.msra.mxu0 %v230
        %243 = vmatmul.bf16.gmra.mxu0 %v233
        %v244 = vpop.f32.mrf.mxu0
        %v245 = vadd.f32 0.0, %v244
        %v246 = vpop.f32.mrf.mxu0
        %v247 = vadd.f32 0.0, %v246
        %248 = vdwg.mxu0
        %v251 = vunpack.c.l.b16 %v180
        %v252 = vunpack.c.l.b16 %v181
        %v253 = vpack.c.b16 %v252, %v251
        %v256 = vunpack.c.l.b16 %v188
        %v257 = vunpack.c.l.b16 %v189
        %v258 = vpack.c.b16 %v257, %v256
        %v261 = vsel %vm203, %v253, 0
        %263 = vmatpush.bf16.msra.mxu0 0
        %264 = vmatpush.bf16.msra.mxu0 0
        %265 = vmatpush.bf16.msra.mxu0 0
        %266 = vmatpush.bf16.msra.mxu0 0
        %267 = vmatpush.bf16.msra.mxu0 0
        %268 = vmatpush.bf16.msra.mxu0 0
        %269 = vmatpush.bf16.msra.mxu0 0
        %270 = vmatpush.bf16.msra.mxu0 %v258
        %271 = vmatmul.bf16.gmra.mxu0 %v261
        %v272 = vpop.f32.mrf.mxu0
        %v273 = vadd.f32 0.0, %v272
        %v274 = vpop.f32.mrf.mxu0
        %v275 = vadd.f32 0.0, %v274
        %276 = vdwg.mxu0
        %v279 = vunpack.c.l.b16 %v182
        %v280 = vunpack.c.l.b16 %v183
        %v281 = vpack.c.b16 %v280, %v279
        %v284 = vunpack.c.l.b16 %v190
        %v285 = vunpack.c.l.b16 %v191
        %v286 = vpack.c.b16 %v285, %v284
        %v289 = vsel %vm203, %v281, 0
        %291 = vmatpush.bf16.msra.mxu0 0
        %292 = vmatpush.bf16.msra.mxu0 0
        %293 = vmatpush.bf16.msra.mxu0 0
        %294 = vmatpush.bf16.msra.mxu0 0
        %295 = vmatpush.bf16.msra.mxu0 0
        %296 = vmatpush.bf16.msra.mxu0 0
        %297 = vmatpush.bf16.msra.mxu0 0
        %298 = vmatpush.bf16.msra.mxu0 %v286
        %299 = vmatmul.bf16.gmra.mxu0 %v289
        %v300 = vpop.f32.mrf.mxu0
        %v301 = vadd.f32 0.0, %v300
        %v302 = vpop.f32.mrf.mxu0
        %v303 = vadd.f32 0.0, %v302
        %304 = vdwg.mxu0
        %v305 = vld [vmem:[%s0] sm:$0xf]
        %v306 = vld [vmem:[%s0 + $0x4] sm:$0xf]
        %v307 = vld [vmem:[%s0 + $0x8] sm:$0xf]
        %v308 = vld [vmem:[%s0 + $0xc] sm:$0xf]
        %v309 = vld [vmem:[%s0 + $0x10] sm:$0xf]
        %v310 = vld [vmem:[%s0 + $0x14] sm:$0xf]
        %v311 = vld [vmem:[%s0 + $0x18] sm:$0xf]
        %v312 = vld [vmem:[%s0 + $0x1c] sm:$0xf]
        %v313 = vld [vmem:[%s0 + $0x20] sm:$0xf]
        %v314 = vld [vmem:[%s0 + $0x24] sm:$0xf]
        %v315 = vld [vmem:[%s0 + $0x28] sm:$0xf]
        %v316 = vld [vmem:[%s0 + $0x2c] sm:$0xf]
        %v317 = vld [vmem:[%s0 + $0x30] sm:$0xf]
        %v318 = vld [vmem:[%s0 + $0x34] sm:$0xf]
        %v319 = vld [vmem:[%s0 + $0x38] sm:$0xf]
        %v320 = vld [vmem:[%s0 + $0x3c] sm:$0xf]
        %v321 = vpack.c.bf16 %v217, %v217
        %v322 = vpack.c.bf16 %v219, %v219
        %v323 = vpack.c.bf16 %v245, %v245
        %v324 = vpack.c.bf16 %v247, %v247
        %v325 = vpack.c.bf16 %v273, %v273
        %v326 = vpack.c.bf16 %v275, %v275
        %v327 = vpack.c.bf16 %v301, %v301
        %v328 = vpack.c.bf16 %v303, %v303
        %v333 = vunpack.c.l.b16 %v305
        %v334 = vunpack.c.l.b16 %v306
        %v335 = vunpack.c.l.b16 %v307
        %v336 = vunpack.c.l.b16 %v308
        %v337 = vpack.c.b16 %v334, %v333
        %v338 = vpack.c.b16 %v336, %v335
        %v341 = vunpack.c.l.b16 %v321
        %v342 = vunpack.c.l.b16 %v322
        %v343 = vpack.c.b16 %v342, %v341
        %v346 = vsel %vm203, %v337, 0
        %v349 = vsel %vm203, %v338, 0
        %351 = vmatpush.bf16.msra.mxu0 0
        %352 = vmatpush.bf16.msra.mxu0 0
        %353 = vmatpush.bf16.msra.mxu0 0
        %354 = vmatpush.bf16.msra.mxu0 0
        %355 = vmatpush.bf16.msra.mxu0 0
        %356 = vmatpush.bf16.msra.mxu0 0
        %357 = vmatpush.bf16.msra.mxu0 0
        %358 = vmatpush.bf16.msra.mxu0 %v343
        %359 = vmatmul.bf16.gmra.mxu0 %v346
        %v360 = vpop.f32.mrf.mxu0
        %v361 = vadd.f32 0.0, %v360
        %v362 = vpop.f32.mrf.mxu0
        %v363 = vadd.f32 0.0, %v362
        %364 = vmatmul.bf16.gmra.mxu0 %v349
        %v365 = vpop.f32.mrf.mxu0
        %v366 = vadd.f32 0.0, %v365
        %v367 = vpop.f32.mrf.mxu0
        %v368 = vadd.f32 0.0, %v367
        %369 = vdwg.mxu0
        %v374 = vunpack.c.l.b16 %v309
        %v375 = vunpack.c.l.b16 %v310
        %v376 = vunpack.c.l.b16 %v311
        %v377 = vunpack.c.l.b16 %v312
        %v378 = vpack.c.b16 %v375, %v374
        %v379 = vpack.c.b16 %v377, %v376
        %v382 = vunpack.c.l.b16 %v323
        %v383 = vunpack.c.l.b16 %v324
        %v384 = vpack.c.b16 %v383, %v382
        %v387 = vsel %vm203, %v378, 0
        %v390 = vsel %vm203, %v379, 0
        %392 = vmatpush.bf16.msra.mxu0 0
        %393 = vmatpush.bf16.msra.mxu0 0
        %394 = vmatpush.bf16.msra.mxu0 0
        %395 = vmatpush.bf16.msra.mxu0 0
        %396 = vmatpush.bf16.msra.mxu0 0
        %397 = vmatpush.bf16.msra.mxu0 0
        %398 = vmatpush.bf16.msra.mxu0 0
        %399 = vmatpush.bf16.msra.mxu0 %v384
        %400 = vmatmul.bf16.gmra.mxu0 %v387
        %v401 = vpop.f32.mrf.mxu0
        %v402 = vadd.f32 0.0, %v401
        %v403 = vpop.f32.mrf.mxu0
        %v404 = vadd.f32 0.0, %v403
        %405 = vmatmul.bf16.gmra.mxu0 %v390
        %v406 = vpop.f32.mrf.mxu0
        %v407 = vadd.f32 0.0, %v406
        %v408 = vpop.f32.mrf.mxu0
        %v409 = vadd.f32 0.0, %v408
        %410 = vdwg.mxu0
        %v415 = vunpack.c.l.b16 %v313
        %v416 = vunpack.c.l.b16 %v314
        %v417 = vunpack.c.l.b16 %v315
        %v418 = vunpack.c.l.b16 %v316
        %v419 = vpack.c.b16 %v416, %v415
        %v420 = vpack.c.b16 %v418, %v417
        %v423 = vunpack.c.l.b16 %v325
        %v424 = vunpack.c.l.b16 %v326
        %v425 = vpack.c.b16 %v424, %v423
        %v428 = vsel %vm203, %v419, 0
        %v431 = vsel %vm203, %v420, 0
        %433 = vmatpush.bf16.msra.mxu0 0
        %434 = vmatpush.bf16.msra.mxu0 0
        %435 = vmatpush.bf16.msra.mxu0 0
        %436 = vmatpush.bf16.msra.mxu0 0
        %437 = vmatpush.bf16.msra.mxu0 0
        %438 = vmatpush.bf16.msra.mxu0 0
        %439 = vmatpush.bf16.msra.mxu0 0
        %440 = vmatpush.bf16.msra.mxu0 %v425
        %441 = vmatmul.bf16.gmra.mxu0 %v428
        %v442 = vpop.f32.mrf.mxu0
        %v443 = vadd.f32 0.0, %v442
        %v444 = vpop.f32.mrf.mxu0
        %v445 = vadd.f32 0.0, %v444
        %446 = vmatmul.bf16.gmra.mxu0 %v431
        %v447 = vpop.f32.mrf.mxu0
        %v448 = vadd.f32 0.0, %v447
        %v449 = vpop.f32.mrf.mxu0
        %v450 = vadd.f32 0.0, %v449
        %451 = vdwg.mxu0
        %v456 = vunpack.c.l.b16 %v317
        %v457 = vunpack.c.l.b16 %v318
        %v458 = vunpack.c.l.b16 %v319
        %v459 = vunpack.c.l.b16 %v320
        %v460 = vpack.c.b16 %v457, %v456
        %v461 = vpack.c.b16 %v459, %v458
        %v464 = vunpack.c.l.b16 %v327
        %v465 = vunpack.c.l.b16 %v328
        %v466 = vpack.c.b16 %v465, %v464
        %v469 = vsel %vm203, %v460, 0
        %v472 = vsel %vm203, %v461, 0
        %474 = vmatpush.bf16.msra.mxu0 0
        %475 = vmatpush.bf16.msra.mxu0 0
        %476 = vmatpush.bf16.msra.mxu0 0
        %477 = vmatpush.bf16.msra.mxu0 0
        %478 = vmatpush.bf16.msra.mxu0 0
        %479 = vmatpush.bf16.msra.mxu0 0
        %480 = vmatpush.bf16.msra.mxu0 0
        %481 = vmatpush.bf16.msra.mxu0 %v466
        %482 = vmatmul.bf16.gmra.mxu0 %v469
        %v483 = vpop.f32.mrf.mxu0
        %v484 = vadd.f32 0.0, %v483
        %v485 = vpop.f32.mrf.mxu0
        %v486 = vadd.f32 0.0, %v485
        %487 = vmatmul.bf16.gmra.mxu0 %v472
        %v488 = vpop.f32.mrf.mxu0
        %v489 = vadd.f32 0.0, %v488
        %v490 = vpop.f32.mrf.mxu0
        %v491 = vadd.f32 0.0, %v490
        %492 = vdwg.mxu0
        %vm493 = vcmask 261120
        %494 = vst.msk [vmem:[%s166] sm:$0xff] %vm493, %v361
        %495 = vst.msk [vmem:[%s166 + $0x8] sm:$0xff] %vm493, %v363
        %496 = vst.msk [vmem:[%s166 + $0x10] sm:$0xff] %vm493, %v366
        %497 = vst.msk [vmem:[%s166 + $0x18] sm:$0xff] %vm493, %v368
        %498 = vst.msk [vmem:[%s166 + $0x20] sm:$0xff] %vm493, %v402
        %499 = vst.msk [vmem:[%s166 + $0x28] sm:$0xff] %vm493, %v404
        %500 = vst.msk [vmem:[%s166 + $0x30] sm:$0xff] %vm493, %v407
        %501 = vst.msk [vmem:[%s166 + $0x38] sm:$0xff] %vm493, %v409
        %502 = vst.msk [vmem:[%s166 + $0x40] sm:$0xff] %vm493, %v443
        %503 = vst.msk [vmem:[%s166 + $0x48] sm:$0xff] %vm493, %v445
        %504 = vst.msk [vmem:[%s166 + $0x50] sm:$0xff] %vm493, %v448
        %505 = vst.msk [vmem:[%s166 + $0x58] sm:$0xff] %vm493, %v450
        %506 = vst.msk [vmem:[%s166 + $0x60] sm:$0xff] %vm493, %v484
        %507 = vst.msk [vmem:[%s166 + $0x68] sm:$0xff] %vm493, %v486
        %508 = vst.msk [vmem:[%s166 + $0x70] sm:$0xff] %vm493, %v489
        %509 = vst.msk [vmem:[%s166 + $0x78] sm:$0xff] %vm493, %v491
        %s510 = sand.u32 %s93, 1
        %s511 = scalar_lea.sflag [#allocation3], %s510
        %s512 = sand.u32 %s93, 1
        %s513 = smul.addr %s512, 128
        %s514 = scalar_lea.vmem [#allocation2], %s513
        // Predicated region
        $region33: #{tpu_custom_call.1} parent=31 // pred_check
          %p515 = pneg %p103
        $region34: #{tpu_custom_call.1} parent=31 // pred_check_branch
          %517 = sbr.rel (%p515) target = $region36
        $region35: #{tpu_custom_call.1} parent=31 // pred_region
          %s518 = smul.u32 4, %s17
          %520 = vsyncadd %s511, 0
          %s521 = smul.addr %s518, 4
          %s522 = smul.addr %s521, 8
          %s523 = scalar_lea.hbm %s3, %s522
          %s524 = sshll.u32 %s514, 4
          %s525 = int_to_ptr.vmem [resolvable:$true] %s524
          %s526 = sshll.u32 %s523, 4
          %s527 = int_to_ptr.hbm [resolvable:$true] %s526
          %532 = dma.vmem_to_hbm [thread:$0]  %s525, 2048, %s527, %s511, 128, 128, 8
        $region36: #{tpu_custom_call.1} parent=31 // pred_fallthru
          _
      $region32: #{tpu_custom_call.1} parent=5 // pred_fallthru
        _
      %p533 = scmp.le.s32.totalorder 2, %s12
      // Predicated region
      $region37: #{tpu_custom_call.1} parent=5 // pred_check
        %p534 = pneg %p533
      $region38: #{tpu_custom_call.1} parent=5 // pred_check_branch
        %536 = sbr.rel (%p534) target = $region40
      $region39: #{tpu_custom_call.1} parent=5 // pred_region
        %s537 = ssub.s32 %s12, 2
        // Predicated region
        $region41: #{tpu_custom_call.1} parent=39 // pred_check
          %p538 = pneg %p109
        $region42: #{tpu_custom_call.1} parent=39 // pred_check_branch
          %540 = sbr.rel (%p538) target = $region44
        $region43: #{tpu_custom_call.1} parent=39 // pred_region
          %s541 = sand.u32 %s94, 1
          %s542 = scalar_lea.sflag [#allocation3], %s541
          %s543 = sand.u32 %s94, 1
          %s544 = smul.addr %s543, 128
          %s545 = scalar_lea.vmem [#allocation2], %s544
          %547 = dma.done %s542, 2048
        $region44: #{tpu_custom_call.1} parent=39 // pred_fallthru
          _
      $region40: #{tpu_custom_call.1} parent=5 // pred_fallthru
        _
    $region6: #{tpu_custom_call.1} parent=1 // loop_footer
      %s16 = sadd.s32 1, %s12
    $region7: #{tpu_custom_call.1} parent=1 // loop_footer_branch
      %11 = sbr.rel target = $region3
    $region8: #{tpu_custom_call.1} parent=1 // loop_exit
      _
    %548 = vsyncpa [#allocation3], 1
    %s549 = scalar_lea.sflag [#allocation3], 1
    %550 = vsyncpa %s549, 1

</llo_original>
